<compile_context>
chip_gen: v7x
topology: tpu7x:2x2x1
jax: 0.10.0
libtpu: 0.0.40
codegen_flags: <defaults>
</compile_context>

<pallas_src>
import functools

import jax
import jax.numpy as jnp
from jax.experimental import pallas as pl
from jax.experimental.pallas import tpu as pltpu

EPS = 1e-5          # PyTorch BatchNorm1d default eps
LANE = 128          # TPU lane width

# Conservative threshold for the whole-K-resident-x variant; well inside v7x's
# 64 MiB physical VMEM (v5e/v6e have 128 MiB and more slack).
_WHOLE_K_VMEM_BUDGET = 40 * 1024 * 1024
_VMEM_CAP = 48 * 1024 * 1024


def _round_up(x, m):
    return (x + m - 1) // m * m


def _pick_tile_n(np_, preferred=256):
    """Largest lane-multiple tile <= `preferred` that divides np_, shrunk so
    there are >= 2 N tiles when np_ allows it (v7x megacore split)."""
    best = LANE
    t = LANE
    limit = min(preferred, np_)
    while t <= limit:
        if np_ % t == 0:
            best = t
        t += LANE
    if best == np_ and np_ >= 2 * LANE:
        t = (np_ // 2 // LANE) * LANE
        while t >= LANE and np_ % t != 0:
            t -= LANE
        if t >= LANE:
            best = t
    return best


def _bn_epilogue(h, gamma, beta, relu, out_dtype):
    """Training-mode BatchNorm1d over the batch axis + optional ReLU."""
    inv_b = jnp.float32(1.0 / h.shape[0])
    mean = jnp.sum(h, axis=0, keepdims=True) * inv_b          # XLU reduction
    d = h - mean
    var = jnp.sum(d * d, axis=0, keepdims=True) * inv_b       # biased variance
    scale = gamma * jax.lax.rsqrt(var + EPS)                   # EUP rsqrt
    y = d * scale + beta
    if relu:
        y = jnp.maximum(y, 0.0)
    return y.astype(out_dtype)


def _linear_bn_kernel_whole_k(x_ref, w_ref, g_ref, beta_ref, o_ref, *, relu):
    """Single-K-step tile: full-K matmul for one (batch, TILE_N) slab, then BN
    (+ ReLU).  x's block index is constant over the grid -> DMA'd once."""
    h = jnp.dot(x_ref[...], w_ref[...], preferred_element_type=jnp.float32)
    o_ref[...] = _bn_epilogue(h, g_ref[...], beta_ref[...], relu, o_ref.dtype)


def _linear_bn_kernel_tiled_k(x_ref, w_ref, g_ref, beta_ref, o_ref, acc_ref,
                              *, relu):
    """Fallback: K-accumulated matmul with f32 VMEM accumulator (P3)."""
    k = pl.program_id(1)

    @pl.when(k == 0)
    def _():
        acc_ref[...] = jnp.zeros_like(acc_ref)

    acc_ref[...] += jnp.dot(x_ref[...], w_ref[...],
                            preferred_element_type=jnp.float32)

    @pl.when(k == pl.num_programs(1) - 1)
    def _():
        o_ref[...] = _bn_epilogue(acc_ref[...], g_ref[...], beta_ref[...],
                                  relu, o_ref.dtype)


def fused_linear_bn(x, w, gamma, beta, *, relu, out_dtype=jnp.float32,
                    tile_n=None, tile_k=512,
                    whole_k_vmem_budget=_WHOLE_K_VMEM_BUDGET,
                    force_k_tiling=False):
    """y = ReLU?( BN_train(x @ w) * gamma + beta ), BN stats over the batch.

    x: (batch, Kp), w: (Kp, Np), gamma/beta: (1, Np) f32; Kp/Np lane-aligned
    (pre-padded by prepare_params / projection_mlp).  The Linear bias is
    intentionally omitted: it cancels exactly under training-mode BatchNorm.
    """
    batch, kp = x.shape
    kp_w, np_ = w.shape
    assert kp == kp_w, "x/w inner dims mismatch"
    assert kp % LANE == 0 and np_ % LANE == 0, "inputs must be lane-padded"

    if tile_n is None:
        tile_n = _pick_tile_n(np_)
    assert np_ % tile_n == 0

    in_item = jnp.dtype(x.dtype).itemsize
    out_item = jnp.dtype(out_dtype).itemsize

    # Conservative whole-K footprint: count double buffers on every stream.
    whole_k_bytes = (2 * batch * kp * in_item
                     + 2 * kp * tile_n * in_item
                     + 2 * batch * tile_n * out_item
                     + 4 * tile_n * 4 * 2)
    use_whole_k = (not force_k_tiling) and whole_k_bytes <= whole_k_vmem_budget

    if use_whole_k:
        vmem_limit = min(max(whole_k_bytes + (8 << 20), 16 << 20), _VMEM_CAP)
        grid = (np_ // tile_n,)
        return pl.pallas_call(
            functools.partial(_linear_bn_kernel_whole_k, relu=relu),
            out_shape=jax.ShapeDtypeStruct((batch, np_), out_dtype),
            grid_spec=pltpu.PrefetchScalarGridSpec(
                num_scalar_prefetch=0,
                grid=grid,
                in_specs=[
                    # Constant block index -> x is DMA'd into VMEM once.
                    pl.BlockSpec((batch, kp), lambda j: (0, 0)),
                    pl.BlockSpec((kp, tile_n), lambda j: (0, j)),
                    pl.BlockSpec((1, tile_n), lambda j: (0, j)),
                    pl.BlockSpec((1, tile_n), lambda j: (0, j)),
                ],
                out_specs=pl.BlockSpec((batch, tile_n), lambda j: (0, j)),
            ),
            compiler_params=pltpu.CompilerParams(
                dimension_semantics=("parallel",),
                vmem_limit_bytes=vmem_limit,
            ),
        )(x, w, gamma, beta)

    # ---- fallback: K-tiled accumulator path (very large batch * K) ----
    tk = max(LANE, (min(tile_k, kp) // LANE) * LANE)
    while kp % tk != 0:
        tk -= LANE

    tiled_bytes = (2 * batch * tk * in_item
                   + 2 * tk * tile_n * in_item
                   + 2 * batch * tile_n * out_item
                   + batch * tile_n * 4        # f32 accumulator scratch
                   + 4 * tile_n * 4 * 2)
    vmem_limit = min(max(tiled_bytes + (8 << 20), 16 << 20), _VMEM_CAP)
    grid = (np_ // tile_n, kp // tk)

    return pl.pallas_call(
        functools.partial(_linear_bn_kernel_tiled_k, relu=relu),
        out_shape=jax.ShapeDtypeStruct((batch, np_), out_dtype),
        grid_spec=pltpu.PrefetchScalarGridSpec(
            num_scalar_prefetch=0,
            grid=grid,
            in_specs=[
                pl.BlockSpec((batch, tk), lambda j, k: (0, k)),
                pl.BlockSpec((tk, tile_n), lambda j, k: (k, j)),
                pl.BlockSpec((1, tile_n), lambda j, k: (0, j)),
                pl.BlockSpec((1, tile_n), lambda j, k: (0, j)),
            ],
            out_specs=pl.BlockSpec((batch, tile_n), lambda j, k: (0, j)),
            scratch_shapes=[pltpu.VMEM((batch, tile_n), jnp.float32)],
        ),
        compiler_params=pltpu.CompilerParams(
            dimension_semantics=("parallel", "arbitrary"),
            vmem_limit_bytes=vmem_limit,
        ),
    )(x, w, gamma, beta)


def prepare_params(w1, g1, beta1, w3, *, compute_dtype=jnp.bfloat16):
    """One-time parameter prep: pad weights / BN params to lane multiples and
    cast matmul operands to the compute dtype (so no per-forward pad/cast).
    Linear biases are dropped — they cancel exactly under training-mode BN."""
    in_dim, hidden = w1.shape
    hidden2, out_dim = w3.shape
    assert hidden == hidden2
    kp1 = _round_up(in_dim, LANE)
    hp = _round_up(hidden, LANE)
    op = _round_up(out_dim, LANE)

    w1p = jnp.pad(w1, ((0, kp1 - in_dim), (0, hp - hidden))).astype(compute_dtype)
    g1p = jnp.pad(jnp.asarray(g1, jnp.float32).reshape(1, -1),
                  ((0, 0), (0, hp - hidden)))
    b1p = jnp.pad(jnp.asarray(beta1, jnp.float32).reshape(1, -1),
                  ((0, 0), (0, hp - hidden)))
    w3p = jnp.pad(w3, ((0, hp - hidden), (0, op - out_dim))).astype(compute_dtype)
    # layer3 BatchNorm1d(affine=False) == gamma=1, beta=0 (padded cols -> 0).
    g3p = jnp.pad(jnp.ones((1, out_dim), jnp.float32), ((0, 0), (0, op - out_dim)))
    b3p = jnp.zeros((1, op), jnp.float32)
    return dict(w1=w1p, g1=g1p, beta1=b1p, w3=w3p, g3=g3p, beta3=b3p,
                in_dim=in_dim, hidden=hidden, out_dim=out_dim,
                compute_dtype=compute_dtype)


def projection_mlp(x, params, **kwargs):
    """projection_MLP forward, num_layers=2 (training-mode BatchNorm)."""
    cd = params["compute_dtype"]
    kp1 = params["w1"].shape[0]
    if x.shape[1] != kp1:
        x = jnp.pad(x, ((0, 0), (0, kp1 - x.shape[1])))
    x = x.astype(cd)

    # layer1: Linear -> BatchNorm1d(affine) -> ReLU. Intermediate stays in the
    # compute dtype (bf16 in production) — half the inter-layer HBM traffic —
    # and its padded width already matches layer 2's padded K, so it is fed
    # straight into the next kernel with no re-pad / re-cast.
    h = fused_linear_bn(x, params["w1"], params["g1"], params["beta1"],
                        relu=True, out_dtype=cd, **kwargs)

    # layer3: Linear -> BatchNorm1d(affine=False).
    y = fused_linear_bn(h, params["w3"], params["g3"], params["beta3"],
                        relu=False, out_dtype=jnp.float32, **kwargs)
    return y[:, :params["out_dim"]]
    # TODO(synk): running_mean / running_var buffer updates (PyTorch training
    # side effect) are not produced; only the forward output is computed.


def reference(x, w1, b1, g1, beta1, w3, b3):
    """Pure-JAX f32 reference with the Linear biases included (verifies that
    dropping them in the kernel is exact under training-mode BN)."""
    h = x @ w1 + b1
    m = h.mean(0, keepdims=True)
    v = ((h - m) ** 2).mean(0, keepdims=True)
    h = (h - m) / jnp.sqrt(v + EPS) * g1 + beta1
    h = jnp.maximum(h, 0.0)
    y = h @ w3 + b3
    m3 = y.mean(0, keepdims=True)
    v3 = ((y - m3) ** 2).mean(0, keepdims=True)
    return (y - m3) / jnp.sqrt(v3 + EPS)


if __name__ == "__main__":
    # Small lane-aligned shapes: 2+ N tiles per layer, K > LANE so the forced
    # fallback path really accumulates over multiple K steps.
    batch, in_dim, out_dim = 16, 384, 256
    hidden_dim = out_dim

    key = jax.random.PRNGKey(0)
    kx, kw1, kb1, kw3, kb3 = jax.random.split(key, 5)

    x = jax.random.normal(kx, (batch, in_dim), dtype=jnp.float32)
    # Linear weights stored as (in_features, out_features).
    w1 = jax.random.normal(kw1, (in_dim, hidden_dim), dtype=jnp.float32) * 0.05
    b1 = jax.random.normal(kb1, (1, hidden_dim), dtype=jnp.float32) * 0.05
    g1 = jnp.ones((hidden_dim,), jnp.float32)       # BatchNorm1d gamma init
    beta1 = jnp.zeros((hidden_dim,), jnp.float32)   # BatchNorm1d beta init
    w3 = jax.random.normal(kw3, (hidden_dim, out_dim), dtype=jnp.float32) * 0.05
    b3 = jax.random.normal(kb3, (1, out_dim), dtype=jnp.float32) * 0.05

    ref = reference(x, w1, b1, g1.reshape(1, -1), beta1.reshape(1, -1), w3, b3)

    # f32 path: tight check of the whole-K-resident-x kernel.
    p32 = prepare_params(w1, g1, beta1, w3, compute_dtype=jnp.float32)
    out_f32 = jax.block_until_ready(projection_mlp(x, p32))
    assert out_f32.shape == (batch, out_dim)
    assert jnp.allclose(out_f32, ref, atol=1e-4, rtol=1e-4)

    # f32 path, forced K-tiled fallback: exercises the accumulator kernel.
    out_tiled = jax.block_until_ready(
        projection_mlp(x, p32, force_k_tiling=True, tile_k=128))
    assert jnp.allclose(out_tiled, ref, atol=1e-4, rtol=1e-4)

    # bf16 production path: bf16 MXU operands + bf16 intermediate (looser tol).
    pbf = prepare_params(w1, g1, beta1, w3, compute_dtype=jnp.bfloat16)
    out_bf16 = jax.block_until_ready(projection_mlp(x, pbf))
    assert out_bf16.shape == (batch, out_dim)
    assert jnp.allclose(out_bf16, ref, atol=5e-2, rtol=5e-2)

    print("KERNEL_OK")
</pallas_src>

<mosaic_0001>
module attributes {stable_mosaic.version = 11 : i64} {
  func.func @_linear_bn_kernel_whole_k(%arg0: i32, %arg1: memref<16x384xf32, #tpu.memory_space<vmem>>, %arg2: memref<384x128xf32, #tpu.memory_space<vmem>>, %arg3: memref<1x128xf32, #tpu.memory_space<vmem>>, %arg4: memref<1x128xf32, #tpu.memory_space<vmem>>, %arg5: memref<16x128xf32, #tpu.memory_space<vmem>>) attributes {dimension_semantics = [#tpu.dimension_semantics<parallel>], iteration_bounds = array<i64: 2>, scalar_prefetch = 0 : i64, scratch_operands = 0 : i64, tpu.core_type = #tpu.core_type<tc>, window_params = [{pipeline_mode = #tpu.pipeline_mode<synchronous>, transform_indices = @transform_0, window_bounds = array<i64: 16, 384>}, {transform_indices = @transform_1, window_bounds = array<i64: 384, 128>}, {transform_indices = @transform_2, window_bounds = array<i64: 1, 128>}, {transform_indices = @transform_3, window_bounds = array<i64: 1, 128>}, {transform_indices = @transform_4, window_bounds = array<i64: 16, 128>}]} {
    %c0 = arith.constant 0 : index
    %c0_0 = arith.constant 0 : index
    %0 = vector.load %arg1[%c0, %c0_0] : memref<16x384xf32, #tpu.memory_space<vmem>>, vector<16x384xf32>
    %c0_1 = arith.constant 0 : index
    %c0_2 = arith.constant 0 : index
    %1 = vector.load %arg2[%c0_1, %c0_2] : memref<384x128xf32, #tpu.memory_space<vmem>>, vector<384x128xf32>
    %cst = arith.constant dense<0.000000e+00> : vector<16x128xf32>
    %2 = tpu.matmul %0, %1, %cst {dimension_numbers = #tpu.dot_dimension_numbers<[1], [0], [0], [1], [0, 0, 1, 1], [], []>} : vector<16x384xf32>, vector<384x128xf32>, vector<16x128xf32> -> vector<16x128xf32>
    %c0_3 = arith.constant 0 : index
    %c0_4 = arith.constant 0 : index
    %3 = vector.load %arg3[%c0_3, %c0_4] : memref<1x128xf32, #tpu.memory_space<vmem>>, vector<1x128xf32>
    %c0_5 = arith.constant 0 : index
    %c0_6 = arith.constant 0 : index
    %4 = vector.load %arg4[%c0_5, %c0_6] : memref<1x128xf32, #tpu.memory_space<vmem>>, vector<1x128xf32>
    %cst_7 = arith.constant dense<0.000000e+00> : vector<128xf32>
    %5 = vector.multi_reduction <add>, %2, %cst_7 [0] : vector<16x128xf32> to vector<128xf32>
    %6 = vector.shape_cast %5 : vector<128xf32> to vector<1x128xf32>
    %cst_8 = arith.constant 6.250000e-02 : f32
    %7 = vector.broadcast %cst_8 : f32 to vector<1x128xf32>
    %8 = arith.mulf %6, %7 : vector<1x128xf32>
    %9 = vector.broadcast %8 : vector<1x128xf32> to vector<16x128xf32>
    %10 = arith.subf %2, %9 : vector<16x128xf32>
    %11 = arith.mulf %10, %10 : vector<16x128xf32>
    %cst_9 = arith.constant dense<0.000000e+00> : vector<128xf32>
    %12 = vector.multi_reduction <add>, %11, %cst_9 [0] : vector<16x128xf32> to vector<128xf32>
    %13 = vector.shape_cast %12 : vector<128xf32> to vector<1x128xf32>
    %cst_10 = arith.constant 6.250000e-02 : f32
    %14 = vector.broadcast %cst_10 : f32 to vector<1x128xf32>
    %15 = arith.mulf %13, %14 : vector<1x128xf32>
    %cst_11 = arith.constant 9.99999974E-6 : f32
    %16 = vector.broadcast %cst_11 : f32 to vector<1x128xf32>
    %17 = arith.addf %15, %16 : vector<1x128xf32>
    %18 = math.rsqrt %17 : vector<1x128xf32>
    %19 = arith.mulf %3, %18 : vector<1x128xf32>
    %20 = vector.broadcast %19 : vector<1x128xf32> to vector<16x128xf32>
    %21 = arith.mulf %10, %20 : vector<16x128xf32>
    %22 = vector.broadcast %4 : vector<1x128xf32> to vector<16x128xf32>
    %23 = arith.addf %21, %22 : vector<16x128xf32>
    %cst_12 = arith.constant 0.000000e+00 : f32
    %24 = vector.broadcast %cst_12 : f32 to vector<16x128xf32>
    %25 = arith.maximumf %23, %24 : vector<16x128xf32>
    %c0_13 = arith.constant 0 : index
    %c0_14 = arith.constant 0 : index
    %26 = vector.load %arg5[%c0_13, %c0_14] : memref<16x128xf32, #tpu.memory_space<vmem>>, vector<16x128xf32>
    tpu.vector_store %arg5[%c0_13, %c0_14], %25 {strides = array<i32>} : memref<16x128xf32, #tpu.memory_space<vmem>>, vector<16x128xf32>,
    return
  }
  func.func @transform_0(%arg0: i32) -> (i32, i32) {
    %c0_i32 = arith.constant 0 : i32
    %c0_i32_0 = arith.constant 0 : i32
    %c0_i32_1 = arith.constant 0 : i32
    return %c0_i32, %c0_i32_0 : i32, i32
  }
  func.func @transform_1(%arg0: i32) -> (i32, i32) {
    %c0_i32 = arith.constant 0 : i32
    %c0_i32_0 = arith.constant 0 : i32
    return %c0_i32, %arg0 : i32, i32
  }
  func.func @transform_2(%arg0: i32) -> (i32, i32) {
    %c0_i32 = arith.constant 0 : i32
    %c0_i32_0 = arith.constant 0 : i32
    return %c0_i32, %arg0 : i32, i32
  }
  func.func @transform_3(%arg0: i32) -> (i32, i32) {
    %c0_i32 = arith.constant 0 : i32
    %c0_i32_0 = arith.constant 0 : i32
    return %c0_i32, %arg0 : i32, i32
  }
  func.func @transform_4(%arg0: i32) -> (i32, i32) {
    %c0_i32 = arith.constant 0 : i32
    %c0_i32_0 = arith.constant 0 : i32
    return %c0_i32, %arg0 : i32, i32
  }
}

</mosaic_0001>

<llo_original>
// kernel: tpu_custom_call.1
$region0: #{tpu_custom_call.1}
  #allocation0 [shape = 'u32[]', space=smem, size = 0x4, offset = 0x4, fixed_abs, tag = 'smem constant byte address 0x4 - core index']
  #allocation1 [shape = 'u32[144,128]{1,0:T(1,128)}', space=vmem, size = 0x12000, scoped, tag = 'internal scratch']
  %s0 = inlined_call_operand.hbm [shape: f32[16,384], index: 0, kind: input, shape index: {}]
  %s1 = inlined_call_operand.hbm [shape: f32[384,256], index: 1, kind: input, shape index: {}]
  %s2 = inlined_call_operand.vmem [shape: f32[1,256], index: 2, kind: input, shape index: {}]
  %s3 = inlined_call_operand.vmem [shape: f32[1,256], index: 3, kind: input, shape index: {}]
  %s4 = inlined_call_operand.hbm [shape: f32[16,256], index: 4, kind: output, shape index: {}]
  %s5 = sld [smem:[#allocation0]]
  $region57: #{tpu_custom_call.1} parent=0
    _
  %s7 = ssub.s32 1, %s5
  %s8 = scalar_select 0, %s7, %s5
  $region1: #{tpu_custom_call.1} parent=0
    #allocation2 [shape = 'u8[24576]{0}', space=vmem, size = 0x6000, scoped, tag = 'input window, operand 0, single buffered']
    #allocation3 [shape = 's32[2]{0}', space=sflag, size = 0x8, scoped, tag = 'scoped memory for tpu_custom_call.1']
    #allocation4 [shape = 's32[2]{0}', space=sflag, size = 0x8, scoped, tag = 'scoped memory for tpu_custom_call.1']
    #allocation5 [shape = 'u8[393216]{0}', space=vmem, size = 0x60000, scoped, tag = 'input window, operand 1']
    #allocation6 [shape = 's32[2]{0}', space=sflag, size = 0x8, scoped, tag = 'scoped memory for tpu_custom_call.1']
    #allocation7 [shape = 'u8[16384]{0}', space=vmem, size = 0x4000, scoped, tag = 'output window, operand 0']
    %9 = vsyncpa [#allocation3], 0
    %10 = vsyncpa [#allocation6], 0
    %s11 = scalar_lea.sflag [#allocation6], 1
    %12 = vsyncpa %s11, 0
    %13 = vsyncpa [#allocation4], 0
    %s14 = scalar_lea.sflag [#allocation4], 1
    %15 = vsyncpa %s14, 0
    loop: start=0, step=1, limit=4
    $region2: #{tpu_custom_call.1} parent=1 // loop_pre_header
      _
    $region3: #{tpu_custom_call.1} parent=1 // loop_header
      %s17 = sphi 0, %s21
      %p18 = scmp.ge.s32.totalorder %s17, 4
      %s25 = sphi 0, %s25
      %s27 = sphi 0, %s25
      %s28 = sphi 0, %s27
      %s42 = sphi 0, %s28
      %s48 = sphi 0, %s50
      %s51 = sphi 0, %s48
      %s52 = sphi 0, %s51
      %s68 = sphi 0, %s52
      %s74 = sphi 0, %s76
      %s77 = sphi 0, %s74
      %s78 = sphi 0, %s77
      %s94 = sphi 0, %s78
      %s100 = sphi 0, %s102
      %s103 = sphi 0, %s100
      %s104 = sphi 0, %s103
      %s120 = sphi 0, %s104
      %s126 = sphi 0, %s128
      %s129 = sphi 0, %s126
      %s130 = sphi 0, %s129
      %s146 = sphi 0, %s130
    $region4: #{tpu_custom_call.1} parent=1 // loop_header_branch
      %20 = sbr.rel (%p18) target = $region8
    $region5: #{tpu_custom_call.1} parent=1 // loop_body
      %s22 = ssub.s32 %s17, 1
      %s23 = ssub.s32 %s17, 2
      %s24 = sadd.s32 %s17, 1
      %s26 = sadd.s32 %s25, 1
      %p29 = scmp.eq.s32.totalorder %s17, 1
      %p30 = scmp.ne.s32.totalorder %s25, %s27
      %p31 = scmp.eq.s32.totalorder %s17, 0
      %p32 = por %p30, %p31
      %p33 = scmp.ne.s32.totalorder %s25, %s27
      %p34 = scmp.eq.s32.totalorder %s22, 1
      %p35 = por %p33, %p34
      %p36 = scmp.ne.s32.totalorder %s27, %s28
      %p37 = scmp.eq.s32.totalorder %s22, 0
      %p38 = por %p36, %p37
      %p39 = scmp.ne.s32.totalorder %s27, %s28
      %p40 = scmp.eq.s32.totalorder %s23, 1
      %p41 = por %p39, %p40
      %p43 = scmp.ne.s32.totalorder %s28, %s42
      %p44 = scmp.eq.s32.totalorder %s23, 0
      %p45 = por %p43, %p44
      %s46 = ssub.s32 %s17, %s24
      %p47 = scmp.eq.s32.totalorder %s46, 0
      %s49 = sadd.s32 %s48, 1
      %s50 = scalar_select %p47, %s48, %s49
      %p53 = pneg %p47
      %p54 = scmp.eq.s32.totalorder %s17, 1
      %p55 = por %p53, %p54
      %p56 = scmp.ne.s32.totalorder %s48, %s51
      %p57 = scmp.eq.s32.totalorder %s17, 0
      %p58 = por %p56, %p57
      %p59 = scmp.ne.s32.totalorder %s48, %s51
      %p60 = scmp.eq.s32.totalorder %s22, 1
      %p61 = por %p59, %p60
      %p62 = scmp.ne.s32.totalorder %s51, %s52
      %p63 = scmp.eq.s32.totalorder %s22, 0
      %p64 = por %p62, %p63
      %p65 = scmp.ne.s32.totalorder %s51, %s52
      %p66 = scmp.eq.s32.totalorder %s23, 1
      %p67 = por %p65, %p66
      %p69 = scmp.ne.s32.totalorder %s52, %s68
      %p70 = scmp.eq.s32.totalorder %s23, 0
      %p71 = por %p69, %p70
      %s72 = ssub.s32 %s17, %s24
      %p73 = scmp.eq.s32.totalorder %s72, 0
      %s75 = sadd.s32 %s74, 1
      %s76 = scalar_select %p73, %s74, %s75
      %p79 = pneg %p73
      %p80 = scmp.eq.s32.totalorder %s17, 1
      %p81 = por %p79, %p80
      %p82 = scmp.ne.s32.totalorder %s74, %s77
      %p83 = scmp.eq.s32.totalorder %s17, 0
      %p84 = por %p82, %p83
      %p85 = scmp.ne.s32.totalorder %s74, %s77
      %p86 = scmp.eq.s32.totalorder %s22, 1
      %p87 = por %p85, %p86
      %p88 = scmp.ne.s32.totalorder %s77, %s78
      %p89 = scmp.eq.s32.totalorder %s22, 0
      %p90 = por %p88, %p89
      %p91 = scmp.ne.s32.totalorder %s77, %s78
      %p92 = scmp.eq.s32.totalorder %s23, 1
      %p93 = por %p91, %p92
      %p95 = scmp.ne.s32.totalorder %s78, %s94
      %p96 = scmp.eq.s32.totalorder %s23, 0
      %p97 = por %p95, %p96
      %s98 = ssub.s32 %s17, %s24
      %p99 = scmp.eq.s32.totalorder %s98, 0
      %s101 = sadd.s32 %s100, 1
      %s102 = scalar_select %p99, %s100, %s101
      %p105 = pneg %p99
      %p106 = scmp.eq.s32.totalorder %s17, 1
      %p107 = por %p105, %p106
      %p108 = scmp.ne.s32.totalorder %s100, %s103
      %p109 = scmp.eq.s32.totalorder %s17, 0
      %p110 = por %p108, %p109
      %p111 = scmp.ne.s32.totalorder %s100, %s103
      %p112 = scmp.eq.s32.totalorder %s22, 1
      %p113 = por %p111, %p112
      %p114 = scmp.ne.s32.totalorder %s103, %s104
      %p115 = scmp.eq.s32.totalorder %s22, 0
      %p116 = por %p114, %p115
      %p117 = scmp.ne.s32.totalorder %s103, %s104
      %p118 = scmp.eq.s32.totalorder %s23, 1
      %p119 = por %p117, %p118
      %p121 = scmp.ne.s32.totalorder %s104, %s120
      %p122 = scmp.eq.s32.totalorder %s23, 0
      %p123 = por %p121, %p122
      %s124 = ssub.s32 %s17, %s24
      %p125 = scmp.eq.s32.totalorder %s124, 0
      %s127 = sadd.s32 %s126, 1
      %s128 = scalar_select %p125, %s126, %s127
      %p131 = pneg %p125
      %p132 = scmp.eq.s32.totalorder %s17, 1
      %p133 = por %p131, %p132
      %p134 = scmp.ne.s32.totalorder %s126, %s129
      %p135 = scmp.eq.s32.totalorder %s17, 0
      %p136 = por %p134, %p135
      %p137 = scmp.ne.s32.totalorder %s126, %s129
      %p138 = scmp.eq.s32.totalorder %s22, 1
      %p139 = por %p137, %p138
      %p140 = scmp.ne.s32.totalorder %s129, %s130
      %p141 = scmp.eq.s32.totalorder %s22, 0
      %p142 = por %p140, %p141
      %p143 = scmp.ne.s32.totalorder %s129, %s130
      %p144 = scmp.eq.s32.totalorder %s23, 1
      %p145 = por %p143, %p144
      %p147 = scmp.ne.s32.totalorder %s130, %s146
      %p148 = scmp.eq.s32.totalorder %s23, 0
      %p149 = por %p147, %p148
      %p150 = scmp.le.s32.totalorder 1, %s17
      %p151 = scmp.lt.s32.totalorder %s17, 3
      %p152 = pnand %p150, %p151
      %p153 = pneg %p152
      // Predicated region
      $region9: #{tpu_custom_call.1} parent=5 // pred_check
        _
      $region10: #{tpu_custom_call.1} parent=5 // pred_check_branch
        %155 = sbr.rel (%p152) target = $region12
      $region11: #{tpu_custom_call.1} parent=5 // pred_region
        %s156 = ssub.s32 %s17, 1
        // Predicated region
        $region13: #{tpu_custom_call.1} parent=11 // pred_check
          %p157 = pneg %p38
        $region14: #{tpu_custom_call.1} parent=11 // pred_check_branch
          %159 = sbr.rel (%p157) target = $region16
        $region15: #{tpu_custom_call.1} parent=11 // pred_region
          %s161 = ssub.s32 768, 768
          %162 = vsyncadd [#allocation3], %s161
          %s163 = sshll.u32 [#allocation2], 4
          %s164 = int_to_ptr.vmem [resolvable:$true] %s163
          %169 = dma.hbm_to_vmem [thread:$0]  %s0, 768, %s164, [#allocation3], 384, 384, 24
        $region16: #{tpu_custom_call.1} parent=11 // pred_fallthru
          _
      $region12: #{tpu_custom_call.1} parent=5 // pred_fallthru
        _
      %p170 = scmp.lt.s32.totalorder %s17, 2
      // Predicated region
      $region17: #{tpu_custom_call.1} parent=5 // pred_check
        %p171 = pneg %p170
      $region18: #{tpu_custom_call.1} parent=5 // pred_check_branch
        %173 = sbr.rel (%p171) target = $region20
      $region19: #{tpu_custom_call.1} parent=5 // pred_region
        // Predicated region
        $region21: #{tpu_custom_call.1} parent=19 // pred_check
          %p174 = pneg %p58
        $region22: #{tpu_custom_call.1} parent=19 // pred_check_branch
          %176 = sbr.rel (%p174) target = $region24
        $region23: #{tpu_custom_call.1} parent=19 // pred_region
          %s177 = sand.u32 %s48, 1
          %s178 = scalar_lea.sflag [#allocation6], %s177
          %s179 = sand.u32 %s48, 1
          %s180 = smul.addr %s179, 384
          %s181 = scalar_lea.vmem [#allocation5], %s180
          %s183 = ssub.s32 6144, 6144
          %184 = vsyncadd %s178, %s183
          %s185 = smul.addr %s17, 128
          %s186 = scalar_lea.hbm %s1, %s185
          %s187 = sshll.u32 %s181, 4
          %s188 = int_to_ptr.vmem [resolvable:$true] %s187
          %193 = dma.hbm_to_vmem [thread:$0]  %s186, 6144, %s188, %s178, 256, 128, 8
        $region24: #{tpu_custom_call.1} parent=19 // pred_fallthru
          _
        // Predicated region
        $region25: #{tpu_custom_call.1} parent=19 // pred_check
          %p194 = pneg %p84
        $region26: #{tpu_custom_call.1} parent=19 // pred_check_branch
          %196 = sbr.rel (%p194) target = $region28
        $region27: #{tpu_custom_call.1} parent=19 // pred_region
          %p197 = scmp.lt.s32.totalorder %s17, 1
          %s198 = scalar_select %p197, %s17, 1
          %s199 = scalar_lea.vmem %s2, %s198
        $region28: #{tpu_custom_call.1} parent=19 // pred_fallthru
          _
        // Predicated region
        $region29: #{tpu_custom_call.1} parent=19 // pred_check
          %p200 = pneg %p110
        $region30: #{tpu_custom_call.1} parent=19 // pred_check_branch
          %202 = sbr.rel (%p200) target = $region32
        $region31: #{tpu_custom_call.1} parent=19 // pred_region
          %p203 = scmp.lt.s32.totalorder %s17, 1
          %s204 = scalar_select %p203, %s17, 1
          %s205 = scalar_lea.vmem %s3, %s204
        $region32: #{tpu_custom_call.1} parent=19 // pred_fallthru
          _
      $region20: #{tpu_custom_call.1} parent=5 // pred_fallthru
        _
      %p206 = scmp.le.s32.totalorder 1, %s17
      %p207 = scmp.lt.s32.totalorder %s17, 3
      %p208 = pnand %p206, %p207
      %p209 = pneg %p208
      // Predicated region
      $region33: #{tpu_custom_call.1} parent=5 // pred_check
        _
      $region34: #{tpu_custom_call.1} parent=5 // pred_check_branch
        %211 = sbr.rel (%p208) target = $region36
      $region35: #{tpu_custom_call.1} parent=5 // pred_region
        %s212 = ssub.s32 %s17, 1
        // Predicated region
        $region37: #{tpu_custom_call.1} parent=35 // pred_check
          %p213 = pneg %p38
        $region38: #{tpu_custom_call.1} parent=35 // pred_check_branch
          %215 = sbr.rel (%p213) target = $region40
        $region39: #{tpu_custom_call.1} parent=35 // pred_region
          %216 = dma.done [#allocation3], 768
        $region40: #{tpu_custom_call.1} parent=35 // pred_fallthru
          _
        %s217 = sand.u32 %s51, 1
        %s218 = scalar_lea.sflag [#allocation6], %s217
        %s219 = sand.u32 %s51, 1
        %s220 = smul.addr %s219, 384
        %s221 = scalar_lea.vmem [#allocation5], %s220
        // Predicated region
        $region41: #{tpu_custom_call.1} parent=35 // pred_check
          %p222 = pneg %p64
        $region42: #{tpu_custom_call.1} parent=35 // pred_check_branch
          %224 = sbr.rel (%p222) target = $region44
        $region43: #{tpu_custom_call.1} parent=35 // pred_region
          %225 = dma.done %s218, 6144
        $region44: #{tpu_custom_call.1} parent=35 // pred_fallthru
          _
        %p226 = pneg %p38
        %p227 = pneg %p35
        %s228 = sand.u32 %s51, 1
        %s229 = scalar_lea.sflag [#allocation6], %s228
        %s230 = sand.u32 %s51, 1
        %s231 = smul.addr %s230, 384
        %s232 = scalar_lea.vmem [#allocation5], %s231
        %p233 = pneg %p64
        %p234 = pneg %p61
        %p235 = scmp.lt.s32.totalorder %s22, 1
        %s236 = scalar_select %p235, %s22, 1
        %s237 = scalar_lea.vmem %s2, %s236
        %p238 = pneg %p90
        %p239 = pneg %p87
        %p240 = scmp.lt.s32.totalorder %s22, 1
        %s241 = scalar_select %p240, %s22, 1
        %s242 = scalar_lea.vmem %s3, %s241
        %p243 = pneg %p116
        %p244 = pneg %p113
        %p245 = pneg %p142
        %p246 = pneg %p139
        %s247 = sand.u32 %s129, 1
        %s248 = scalar_lea.sflag [#allocation4], %s247
        %s249 = sand.u32 %s129, 1
        %s250 = smul.addr %s249, 16
        %s251 = scalar_lea.vmem [#allocation7], %s250
        %p252 = scmp.lt.s32.totalorder %s22, 1
        %s253 = scalar_select %p252, %s22, 1
        %s254 = scalar_lea.vmem %s2, %s253
        %p255 = scmp.lt.s32.totalorder %s22, 1
        %s256 = scalar_select %p255, %s22, 1
        %s257 = scalar_lea.vmem %s3, %s256
        %v258 = vld [vmem:[#allocation2] sm:$0xff]
        %v259 = vld [vmem:[#allocation2 + $0x8] sm:$0xff]
        %v260 = vld [vmem:[#allocation2 + $0x10] sm:$0xff]
        %v261 = vld [vmem:[#allocation2 + $0x18] sm:$0xff]
        %v262 = vld [vmem:[#allocation2 + $0x20] sm:$0xff]
        %v263 = vld [vmem:[#allocation2 + $0x28] sm:$0xff]
        %v264 = vld [vmem:[%s221] sm:$0xff]
        %v265 = vld [vmem:[%s221 + $0x8] sm:$0xff]
        %v266 = vld [vmem:[%s221 + $0x10] sm:$0xff]
        %v267 = vld [vmem:[%s221 + $0x18] sm:$0xff]
        %v268 = vld [vmem:[%s221 + $0x20] sm:$0xff]
        %v269 = vld [vmem:[%s221 + $0x28] sm:$0xff]
        %v270 = vld [vmem:[%s221 + $0x30] sm:$0xff]
        %v271 = vld [vmem:[%s221 + $0x38] sm:$0xff]
        %v272 = vld [vmem:[%s221 + $0x40] sm:$0xff]
        %v273 = vld [vmem:[%s221 + $0x48] sm:$0xff]
        %v274 = vld [vmem:[%s221 + $0x50] sm:$0xff]
        %v275 = vld [vmem:[%s221 + $0x58] sm:$0xff]
        %v276 = vld [vmem:[%s221 + $0x60] sm:$0xff]
        %v277 = vld [vmem:[%s221 + $0x68] sm:$0xff]
        %v278 = vld [vmem:[%s221 + $0x70] sm:$0xff]
        %v279 = vld [vmem:[%s221 + $0x78] sm:$0xff]
        %v280 = vld [vmem:[%s221 + $0x80] sm:$0xff]
        %v281 = vld [vmem:[%s221 + $0x88] sm:$0xff]
        %v282 = vld [vmem:[%s221 + $0x90] sm:$0xff]
        %v283 = vld [vmem:[%s221 + $0x98] sm:$0xff]
        %v284 = vld [vmem:[%s221 + $0xa0] sm:$0xff]
        %v285 = vld [vmem:[%s221 + $0xa8] sm:$0xff]
        %v286 = vld [vmem:[%s221 + $0xb0] sm:$0xff]
        %v287 = vld [vmem:[%s221 + $0xb8] sm:$0xff]
        %v288 = vld [vmem:[%s221 + $0xc0] sm:$0xff]
        %v289 = vld [vmem:[%s221 + $0xc8] sm:$0xff]
        %v290 = vld [vmem:[%s221 + $0xd0] sm:$0xff]
        %v291 = vld [vmem:[%s221 + $0xd8] sm:$0xff]
        %v292 = vld [vmem:[%s221 + $0xe0] sm:$0xff]
        %v293 = vld [vmem:[%s221 + $0xe8] sm:$0xff]
        %v294 = vld [vmem:[%s221 + $0xf0] sm:$0xff]
        %v295 = vld [vmem:[%s221 + $0xf8] sm:$0xff]
        %v296 = vld [vmem:[%s221 + $0x100] sm:$0xff]
        %v297 = vld [vmem:[%s221 + $0x108] sm:$0xff]
        %v298 = vld [vmem:[%s221 + $0x110] sm:$0xff]
        %v299 = vld [vmem:[%s221 + $0x118] sm:$0xff]
        %v300 = vld [vmem:[%s221 + $0x120] sm:$0xff]
        %v301 = vld [vmem:[%s221 + $0x128] sm:$0xff]
        %v302 = vld [vmem:[%s221 + $0x130] sm:$0xff]
        %v303 = vld [vmem:[%s221 + $0x138] sm:$0xff]
        %v304 = vld [vmem:[%s221 + $0x140] sm:$0xff]
        %v305 = vld [vmem:[%s221 + $0x148] sm:$0xff]
        %v306 = vld [vmem:[%s221 + $0x150] sm:$0xff]
        %v307 = vld [vmem:[%s221 + $0x158] sm:$0xff]
        %v308 = vld [vmem:[%s221 + $0x160] sm:$0xff]
        %v309 = vld [vmem:[%s221 + $0x168] sm:$0xff]
        %v310 = vld [vmem:[%s221 + $0x170] sm:$0xff]
        %v311 = vld [vmem:[%s221 + $0x178] sm:$0xff]
        %312 = vmatprep.subr.mxu0 0.0
        %313 = vmatpush1.msra.mxu0 %v264
        %314 = vmatprep.subr.mxu0 0.0
        %315 = vmatpush1.msra.mxu0 %v265
        %316 = vmatprep.subr.mxu0 0.0
        %317 = vmatpush1.msra.mxu0 %v266
        %318 = vmatprep.subr.mxu0 0.0
        %319 = vmatpush1.msra.mxu0 %v267
        %320 = vmatprep.subr.mxu0 0.0
        %321 = vmatpush1.msra.mxu0 %v268
        %322 = vmatprep.subr.mxu0 0.0
        %323 = vmatpush1.msra.mxu0 %v269
        %324 = vmatprep.subr.mxu0 0.0
        %325 = vmatpush1.msra.mxu0 %v270
        %326 = vmatprep.subr.mxu0 0.0
        %327 = vmatpush1.msra.mxu0 %v271
        %328 = vmatprep.subr.mxu0 0.0
        %329 = vmatpush1.msra.mxu0 %v272
        %330 = vmatprep.subr.mxu0 0.0
        %331 = vmatpush1.msra.mxu0 %v273
        %332 = vmatprep.subr.mxu0 0.0
        %333 = vmatpush1.msra.mxu0 %v274
        %334 = vmatprep.subr.mxu0 0.0
        %335 = vmatpush1.msra.mxu0 %v275
        %336 = vmatprep.subr.mxu0 0.0
        %337 = vmatpush1.msra.mxu0 %v276
        %338 = vmatprep.subr.mxu0 0.0
        %339 = vmatpush1.msra.mxu0 %v277
        %340 = vmatprep.subr.mxu0 0.0
        %341 = vmatpush1.msra.mxu0 %v278
        %342 = vmatprep.subr.mxu0 0.0
        %343 = vmatpush1.msra.mxu0 %v279
        %344 = vmatprep.subr.mxu0 0.0
        %345 = vmatpush1.msra.mxu0 %v280
        %346 = vmatprep.subr.mxu0 0.0
        %347 = vmatpush1.msra.mxu0 %v281
        %348 = vmatprep.subr.mxu0 0.0
        %349 = vmatpush1.msra.mxu0 %v282
        %350 = vmatprep.subr.mxu0 0.0
        %351 = vmatpush1.msra.mxu0 %v283
        %352 = vmatprep.subr.mxu0 0.0
        %353 = vmatpush1.msra.mxu0 %v284
        %354 = vmatprep.subr.mxu0 0.0
        %355 = vmatpush1.msra.mxu0 %v285
        %356 = vmatprep.subr.mxu0 0.0
        %357 = vmatpush1.msra.mxu0 %v286
        %358 = vmatprep.subr.mxu0 0.0
        %359 = vmatpush1.msra.mxu0 %v287
        %360 = vmatprep.subr.mxu0 0.0
        %361 = vmatpush1.msra.mxu0 %v288
        %362 = vmatprep.subr.mxu0 0.0
        %363 = vmatpush1.msra.mxu0 %v289
        %364 = vmatprep.subr.mxu0 0.0
        %365 = vmatpush1.msra.mxu0 %v290
        %366 = vmatprep.subr.mxu0 0.0
        %367 = vmatpush1.msra.mxu0 %v291
        %368 = vmatprep.subr.mxu0 0.0
        %369 = vmatpush1.msra.mxu0 %v292
        %370 = vmatprep.subr.mxu0 0.0
        %371 = vmatpush1.msra.mxu0 %v293
        %372 = vmatprep.subr.mxu0 0.0
        %373 = vmatpush1.msra.mxu0 %v294
        %374 = vmatprep.subr.mxu0 0.0
        %375 = vmatpush1.msra.mxu0 %v295
        %376 = vmatprep.mubr.f32.mxu0 %v259
        %377 = vmatmul.mubr.f32.gmra.mrb[0].mxu0 %v258
        %v378 = vpop.f32.mrb[0].mxu0
        %v379 = vadd.f32 0.0, %v378
        %v380 = vpop.f32.mrb[0].mxu0
        %381 = vmatprep.mubr.f32.mxu0 %v262
        %382 = vmatmul.mubr.f32.gmra.mrb[0].mxu0 %v261
        %v383 = vpop.f32.mrb[0].mxu0
        %v384 = vadd.f32 0.0, %v383
        %v385 = vpop.f32.mrb[0].mxu0
        %386 = vdwg.mxu0
        %387 = vmatprep.subr.mxu0 0.0
        %388 = vmatpush1.msra.mxu0 %v296
        %389 = vmatprep.subr.mxu0 0.0
        %390 = vmatpush1.msra.mxu0 %v297
        %391 = vmatprep.subr.mxu0 0.0
        %392 = vmatpush1.msra.mxu0 %v298
        %393 = vmatprep.subr.mxu0 0.0
        %394 = vmatpush1.msra.mxu0 %v299
        %395 = vmatprep.subr.mxu0 0.0
        %396 = vmatpush1.msra.mxu0 %v300
        %397 = vmatprep.subr.mxu0 0.0
        %398 = vmatpush1.msra.mxu0 %v301
        %399 = vmatprep.subr.mxu0 0.0
        %400 = vmatpush1.msra.mxu0 %v302
        %401 = vmatprep.subr.mxu0 0.0
        %402 = vmatpush1.msra.mxu0 %v303
        %403 = vmatprep.subr.mxu0 0.0
        %404 = vmatpush1.msra.mxu0 %v304
        %405 = vmatprep.subr.mxu0 0.0
        %406 = vmatpush1.msra.mxu0 %v305
        %407 = vmatprep.subr.mxu0 0.0
        %408 = vmatpush1.msra.mxu0 %v306
        %409 = vmatprep.subr.mxu0 0.0
        %410 = vmatpush1.msra.mxu0 %v307
        %411 = vmatprep.subr.mxu0 0.0
        %412 = vmatpush1.msra.mxu0 %v308
        %413 = vmatprep.subr.mxu0 0.0
        %414 = vmatpush1.msra.mxu0 %v309
        %415 = vmatprep.subr.mxu0 0.0
        %416 = vmatpush1.msra.mxu0 %v310
        %417 = vmatprep.subr.mxu0 0.0
        %418 = vmatpush1.msra.mxu0 %v311
        %419 = vmatprep.subr.mxu0 0.0
        %420 = vmatpush1.msra.mxu0 0.0
        %421 = vmatprep.subr.mxu0 0.0
        %422 = vmatpush1.msra.mxu0 0.0
        %423 = vmatprep.subr.mxu0 0.0
        %424 = vmatpush1.msra.mxu0 0.0
        %425 = vmatprep.subr.mxu0 0.0
        %426 = vmatpush1.msra.mxu0 0.0
        %427 = vmatprep.subr.mxu0 0.0
        %428 = vmatpush1.msra.mxu0 0.0
        %429 = vmatprep.subr.mxu0 0.0
        %430 = vmatpush1.msra.mxu0 0.0
        %431 = vmatprep.subr.mxu0 0.0
        %432 = vmatpush1.msra.mxu0 0.0
        %433 = vmatprep.subr.mxu0 0.0
        %434 = vmatpush1.msra.mxu0 0.0
        %435 = vmatprep.subr.mxu0 0.0
        %436 = vmatpush1.msra.mxu0 0.0
        %437 = vmatprep.subr.mxu0 0.0
        %438 = vmatpush1.msra.mxu0 0.0
        %439 = vmatprep.subr.mxu0 0.0
        %440 = vmatpush1.msra.mxu0 0.0
        %441 = vmatprep.subr.mxu0 0.0
        %442 = vmatpush1.msra.mxu0 0.0
        %443 = vmatprep.subr.mxu0 0.0
        %444 = vmatpush1.msra.mxu0 0.0
        %445 = vmatprep.subr.mxu0 0.0
        %446 = vmatpush1.msra.mxu0 0.0
        %447 = vmatprep.subr.mxu0 0.0
        %448 = vmatpush1.msra.mxu0 0.0
        %449 = vmatprep.subr.mxu0 0.0
        %450 = vmatpush1.msra.mxu0 0.0
        %451 = vmatprep.mubr.f32.mxu0 0.0
        %452 = vmatmul.mubr.f32.gmra.mrb[0].mxu0 %v260
        %v453 = vpop.f32.mrb[0].mxu0
        %v454 = vadd.f32 %v379, %v453
        %v455 = vpop.f32.mrb[0].mxu0
        %456 = vmatprep.mubr.f32.mxu0 0.0
        %457 = vmatmul.mubr.f32.gmra.mrb[0].mxu0 %v263
        %v458 = vpop.f32.mrb[0].mxu0
        %v459 = vadd.f32 %v384, %v458
        %v460 = vpop.f32.mrb[0].mxu0
        %461 = vdwg.mxu0
        %v462 = vld [vmem:[%s254] sm:$0x1]
        %v463 = vld [vmem:[%s257] sm:$0x1]
        %v464 = vadd.f32 %v454, %v459
        %v465 = vrot.slane %v464, 4
        %v466 = vadd.f32 %v464, %v465
        %v467 = vrot.slane %v466, 2
        %v468 = vadd.f32 %v466, %v467
        %v469 = vrot.slane %v468, 1
        %v470 = vadd.f32 %v468, %v469
        %v471 = vmul.f32 %v470, 0.0625
        %v472 = vsub.f32 %v454, %v471
        %v473 = vsub.f32 %v459, %v471
        %v474 = vmul.f32 %v472, %v472
        %v475 = vmul.f32 %v473, %v473
        %v476 = vadd.f32 %v474, %v475
        %v477 = vrot.slane %v476, 4
        %v478 = vadd.f32 %v476, %v477
        %v479 = vrot.slane %v478, 2
        %v480 = vadd.f32 %v478, %v479
        %v481 = vrot.slane %v480, 1
        %v482 = vadd.f32 %v480, %v481
        %v483 = vmul.f32 %v482, 0.0625
        %v484 = vadd.f32 %v483, 1e-05
        %v485 = vrsqrt.pop %v484
        %v486 = vmul.f32 %v462, %v485
        %v488 = vlaneseq
        %v489 = vshrl.u32 %v488, 7
        %v490 = vsub.s32 0, %v489
        %v491 = vrot.slane %v486, %v490
        %v493 = vmul.f32 %v472, %v491
        %v494 = vmul.f32 %v473, %v491
        %v496 = vlaneseq
        %v497 = vshrl.u32 %v496, 7
        %v498 = vsub.s32 0, %v497
        %v499 = vrot.slane %v463, %v498
        %v501 = vadd.f32 %v493, %v499
        %v502 = vadd.f32 %v494, %v499
        %v503 = vmax.f32 %v501, 0.0
        %v504 = vmax.f32 %v502, 0.0
        %505 = vst [vmem:[%s251] sm:$0xff] %v503
        %506 = vst [vmem:[%s251 + $0x8] sm:$0xff] %v504
        %s507 = sand.u32 %s129, 1
        %s508 = scalar_lea.sflag [#allocation4], %s507
        %s509 = sand.u32 %s129, 1
        %s510 = smul.addr %s509, 16
        %s511 = scalar_lea.vmem [#allocation7], %s510
        // Predicated region
        $region45: #{tpu_custom_call.1} parent=35 // pred_check
          %p512 = pneg %p139
        $region46: #{tpu_custom_call.1} parent=35 // pred_check_branch
          %514 = sbr.rel (%p512) target = $region48
        $region47: #{tpu_custom_call.1} parent=35 // pred_region
          %s516 = ssub.s32 256, 256
          %517 = vsyncadd %s508, %s516
          %s518 = smul.addr %s22, 128
          %s519 = scalar_lea.hbm %s4, %s518
          %s520 = sshll.u32 %s511, 4
          %s521 = int_to_ptr.vmem [resolvable:$true] %s520
          %526 = dma.vmem_to_hbm [thread:$0]  %s521, 256, %s519, %s508, 128, 256, 8
        $region48: #{tpu_custom_call.1} parent=35 // pred_fallthru
          _
      $region36: #{tpu_custom_call.1} parent=5 // pred_fallthru
        _
      %p527 = scmp.le.s32.totalorder 2, %s17
      // Predicated region
      $region49: #{tpu_custom_call.1} parent=5 // pred_check
        %p528 = pneg %p527
      $region50: #{tpu_custom_call.1} parent=5 // pred_check_branch
        %530 = sbr.rel (%p528) target = $region52
      $region51: #{tpu_custom_call.1} parent=5 // pred_region
        %s531 = ssub.s32 %s17, 2
        // Predicated region
        $region53: #{tpu_custom_call.1} parent=51 // pred_check
          %p532 = pneg %p145
        $region54: #{tpu_custom_call.1} parent=51 // pred_check_branch
          %534 = sbr.rel (%p532) target = $region56
        $region55: #{tpu_custom_call.1} parent=51 // pred_region
          %s535 = sand.u32 %s130, 1
          %s536 = scalar_lea.sflag [#allocation4], %s535
          %s537 = sand.u32 %s130, 1
          %s538 = smul.addr %s537, 16
          %s539 = scalar_lea.vmem [#allocation7], %s538
          %540 = dma.done %s536, 256
        $region56: #{tpu_custom_call.1} parent=51 // pred_fallthru
          _
      $region52: #{tpu_custom_call.1} parent=5 // pred_fallthru
        _
    $region6: #{tpu_custom_call.1} parent=1 // loop_footer
      %s21 = sadd.s32 1, %s17
    $region7: #{tpu_custom_call.1} parent=1 // loop_footer_branch
      %16 = sbr.rel target = $region3
    $region8: #{tpu_custom_call.1} parent=1 // loop_exit
      _
    %541 = vsyncpa [#allocation3], 1
    %s542 = scalar_lea.sflag [#allocation3], 1
    %543 = vsyncpa %s542, 1
    %544 = vsyncpa [#allocation6], 1
    %s545 = scalar_lea.sflag [#allocation6], 1
    %546 = vsyncpa %s545, 1
    %547 = vsyncpa [#allocation4], 1
    %s548 = scalar_lea.sflag [#allocation4], 1
    %549 = vsyncpa %s548, 1

</llo_original>
